<compile_context>
chip_gen: v5e
topology: v5e:2x2
jax: 0.10.0
libtpu: 0.0.40
codegen_flags: <defaults>
</compile_context>

<pallas_src>
import jax
import jax.numpy as jnp
from jax.experimental import pallas as pl
from jax.experimental.pallas import tpu as pltpu


_VMEM_BUDGET_PER_BUFFER = 8 * 1024 * 1024      # ~8 MiB per input buffer (x2 dbl-buffered)
_VMEM_LIMIT_BYTES = 32 * 1024 * 1024           # raise v5e's 16 MiB default, safe on v7x


def _cdiv(a, b):
    return -(-a // b)


def _round_up(x, m):
    return ((x + m - 1) // m) * m


def _pick_tile(n, bytes_per_item, align, min_grid=2, budget=_VMEM_BUDGET_PER_BUFFER):
    """Largest tile (multiple of `align`, or == n) fitting the VMEM byte budget,
    split further so the grid has >= min_grid steps when n is large enough
    (keeps both v7x TensorCores busy with dimension_semantics=('parallel',))."""
    cap = max(align, (budget // max(bytes_per_item, 1)) // align * align)
    blocks = _cdiv(n, cap)
    if n >= min_grid * align:
        blocks = max(blocks, min_grid)
    tile = min(cap, _round_up(_cdiv(n, blocks), align))
    return n if tile >= n else tile


# ----------------------------------------------------------------------------
# Kernel 1a: log-diag-cov, large-T path.  Block (NL, C, T); reduce over lanes.
# ----------------------------------------------------------------------------
def _log_diag_cov_rows_kernel(x_ref, o_ref):
    x = x_ref[...].astype(jnp.float32)             # (NL, C, T)
    t = x.shape[-1]
    s = jnp.sum(x, axis=-1)                        # (NL, C)
    sq = jnp.sum(x * x, axis=-1)                   # (NL, C)
    # One-pass unbiased variance: (sumsq - sum^2/T) / (T-1).  Clamp at 0 so a
    # constant series gives log(0) = -inf (matching torch) rather than NaN.
    var = jnp.maximum((sq - s * s / t) / (t - 1), 0.0)
    out = jnp.log(var)
    out = jnp.where(out == -jnp.inf, 0.0, out)     # torch: out[isneginf(out)] = 0
    o_ref[...] = out.astype(o_ref.dtype)


# ----------------------------------------------------------------------------
# Kernel 1b: log-diag-cov, small-T path.  Block (C, T, NL) with the batch axis
# in lanes; reduce over the T (sublane) axis.
# ----------------------------------------------------------------------------
def _log_diag_cov_lanes_kernel(x_ref, o_ref):
    x = x_ref[...].astype(jnp.float32)             # (C, T, NL)
    t = x.shape[1]
    s = jnp.sum(x, axis=1)                         # (C, NL)
    sq = jnp.sum(x * x, axis=1)                    # (C, NL)
    var = jnp.maximum((sq - s * s / t) / (t - 1), 0.0)
    out = jnp.log(var)
    out = jnp.where(out == -jnp.inf, 0.0, out)
    o_ref[...] = out.astype(o_ref.dtype)


def _log_diag_cov_pallas(x_flat):
    """x_flat: (N, C, T) -> (N, C) float32."""
    n, c, t = x_flat.shape
    cost = pl.CostEstimate(
        flops=3 * n * c * t,
        transcendentals=n * c,
        bytes_accessed=n * c * t * x_flat.dtype.itemsize + n * c * 4,
    )
    params = pltpu.CompilerParams(
        dimension_semantics=("parallel",), vmem_limit_bytes=_VMEM_LIMIT_BYTES)

    if t >= 128:
        # ---- Path A: no transpose, no pad.  DMA is contiguous per batch row.
        # VMEM footprint of one batch row after (8,128) tiling of (C, T):
        row_bytes = _round_up(c, 8) * _round_up(t, 128) * 4
        nl = _pick_tile(n, row_bytes, align=8)     # align=8: nl is 2nd-last out dim
        out = pl.pallas_call(
            _log_diag_cov_rows_kernel,
            out_shape=jax.ShapeDtypeStruct((n, c), jnp.float32),
            grid=(_cdiv(n, nl),),                  # ragged tail -> masked edge block
            in_specs=[pl.BlockSpec((nl, c, t), lambda i: (i, 0, 0))],
            out_specs=pl.BlockSpec((nl, c), lambda i: (i, 0)),
            compiler_params=params,
            cost_estimate=cost,
        )(x_flat)
        return out

    # ---- Path B: small T -> batch in lanes so vregs stay packed.  The
    # transpose is a full-array copy but only fires in the small-T regime.
    xt = jnp.transpose(x_flat, (1, 2, 0))          # (C, T, N)
    col_bytes = c * _round_up(t, 8) * 4            # padded VMEM bytes per lane column
    if n <= 256:
        nl, n_pad = n, n                           # single block: last dim == full dim
    else:
        nl = _pick_tile(n, col_bytes, align=128)   # lane tile, multiple of 128
        n_pad = _round_up(n, nl)
        if n_pad != n:
            # Pad only the ragged tail (< nl lanes); fuses with the transpose copy.
            xt = jnp.pad(xt, ((0, 0), (0, 0), (0, n_pad - n)))
    out = pl.pallas_call(
        _log_diag_cov_lanes_kernel,
        out_shape=jax.ShapeDtypeStruct((c, n_pad), jnp.float32),
        grid=(_cdiv(n_pad, nl),),
        in_specs=[pl.BlockSpec((c, t, nl), lambda i: (0, 0, i))],
        out_specs=pl.BlockSpec((c, nl), lambda i: (0, i)),
        compiler_params=params,
        cost_estimate=cost,
    )(xt)
    return out[:, :n].T                            # (N, C)


# ----------------------------------------------------------------------------
# Kernel 2: covariance matrices, NB (b,f) slices per grid step.
# Block layout: x_ref (NB, C, T); o_ref (NB, C, C).  One-pass: Gram + rank-1
# mean correction, so xm is never materialized.
# ----------------------------------------------------------------------------
def _cov_kernel(x_ref, o_ref):
    x = x_ref[...].astype(jnp.float32)             # (NB, C, T)
    t = x.shape[-1]
    # Batched contraction over T (dot_general batch (0,0), contract (2,2));
    # no per-slice transpose of the operand is required for this pattern.
    gram = jnp.einsum("nct,ndt->ncd", x, x, preferred_element_type=jnp.float32)
    s = jnp.sum(x, axis=-1)                        # (NB, C)  (= T * mean)
    # cov = (X X^T - T * mean mean^T) / (T-1); can lose precision if |mean|>>std.
    cov = (gram - s[:, :, None] * s[:, None, :] / t) / (t - 1)
    o_ref[...] = cov.astype(o_ref.dtype)


def _cov_pallas(x_flat):
    """x_flat: (N, C, T) -> (N, C, C) float32."""
    n, c, t = x_flat.shape
    row_bytes = _round_up(c, 8) * _round_up(t, 128) * 4
    nb = _pick_tile(n, row_bytes, align=8)
    cost = pl.CostEstimate(
        flops=2 * n * c * c * t + 3 * n * c * c,
        transcendentals=0,
        bytes_accessed=n * c * t * x_flat.dtype.itemsize + n * c * c * 4,
    )
    return pl.pallas_call(
        _cov_kernel,
        out_shape=jax.ShapeDtypeStruct((n, c, c), jnp.float32),
        grid=(_cdiv(n, nb),),                      # ragged tail -> masked edge block
        in_specs=[pl.BlockSpec((nb, c, t), lambda i: (i, 0, 0))],
        out_specs=pl.BlockSpec((nb, c, c), lambda i: (i, 0, 0)),
        compiler_params=pltpu.CompilerParams(
            dimension_semantics=("parallel",), vmem_limit_bytes=_VMEM_LIMIT_BYTES),
        cost_estimate=cost,
    )(x_flat)


def _logm_eig(cov):
    """Batched matrix logarithm via eigendecomposition (plain JAX glue)."""
    # TODO(synk): torch.symeig has no Pallas equivalent; a fixed-sweep batched
    # 8x8 Jacobi Pallas kernel would remove this likely end-to-end bottleneck.
    e, v = jnp.linalg.eigh(cov)
    e = jnp.maximum(e, 1e-10)
    log_e = jnp.log(e)
    return jnp.einsum("...ik,...k,...jk->...ij", v, log_e, v)


class SpatialFeatureExtractor:
    """JAX/Pallas port of the PyTorch SpatialFeatureExtractor."""

    def __init__(self, kind, n_channels):
        self.kind = kind
        self.n_channels = n_channels
        # Row-major upper-triangle order, matching torch.triu_indices.
        self.inds = jnp.triu_indices(n_channels)

    def __call__(self, x):
        """x.shape = (B, F, C, T)"""
        b, f, c, t = x.shape
        x_flat = x.reshape(b * f, c, t)
        if self.kind == "log_diag_cov":
            out = _log_diag_cov_pallas(x_flat)               # (B*F, C)
            return out.reshape(b, f, c)
        elif self.kind == "logm_cov_eig":
            cov = _cov_pallas(x_flat).reshape(b, f, c, c)    # (B, F, C, C)
            logm_cov = _logm_eig(cov)
            return logm_cov[:, :, self.inds[0], self.inds[1]]
        else:
            return None

    @property
    def n_outputs(self):
        if self.kind == "log_diag_cov":
            return self.n_channels
        return int(self.n_channels * (self.n_channels + 1) / 2)


# ----------------------------------------------------------------------------
# reference (pure jnp) implementations for checking
# ----------------------------------------------------------------------------
def _ref_log_diag_cov(x):
    v = jnp.var(x, axis=3, ddof=1)
    out = jnp.log(v)
    return jnp.where(jnp.isneginf(out), 0.0, out)


def _ref_logm_cov_eig(x, inds):
    xm = x - x.mean(axis=3, keepdims=True)
    cov = jnp.einsum("bfct,bfdt->bfcd", xm, xm) / (x.shape[3] - 1)
    logm = _logm_eig(cov)
    return logm[:, :, inds[0], inds[1]]


def _check(B, F, C, T, key):
    x = jax.random.normal(key, (B, F, C, T), dtype=jnp.float32)

    sfe_diag = SpatialFeatureExtractor("log_diag_cov", C)
    out_diag = jax.block_until_ready(sfe_diag(x))
    assert out_diag.shape == (B, F, C)
    ref_diag = _ref_log_diag_cov(x)
    assert jnp.allclose(out_diag, ref_diag, atol=1e-4, rtol=1e-4)

    sfe_logm = SpatialFeatureExtractor("logm_cov_eig", C)
    out_logm = jax.block_until_ready(sfe_logm(x))
    assert out_logm.shape == (B, F, sfe_logm.n_outputs)
    ref_logm = _ref_logm_cov_eig(x, sfe_logm.inds)
    assert jnp.allclose(out_logm, ref_logm, atol=1e-3, rtol=1e-3)


if __name__ == "__main__":
    key = jax.random.PRNGKey(0)
    k1, k2 = jax.random.split(key)

    # Small T -> batch-in-lanes path; single-block cov.
    _check(B=2, F=4, C=8, T=16, key=k1)
    # Large T -> direct (N, C, T) path (no transpose); tiled grid (>=2 blocks)
    # with a ragged last block (N=20, tile=16) exercising masked edge stores.
    _check(B=4, F=5, C=8, T=256, key=k2)

    print("KERNEL_OK")
</pallas_src>

<mosaic_0001>
module attributes {stable_mosaic.version = 11 : i64} {
  func.func @_log_diag_cov_lanes_kernel(%arg0: i32, %arg1: memref<8x16x8xf32, #tpu.memory_space<vmem>>, %arg2: memref<8x8xf32, #tpu.memory_space<vmem>>) attributes {dimension_semantics = [#tpu.dimension_semantics<parallel>], iteration_bounds = array<i64: 1>, scalar_prefetch = 0 : i64, scratch_operands = 0 : i64, tpu.core_type = #tpu.core_type<tc>, window_params = [{transform_indices = @transform_0, window_bounds = array<i64: 8, 16, 8>}, {transform_indices = @transform_1, window_bounds = array<i64: 8, 8>}]} {
    %c0 = arith.constant 0 : index
    %c0_0 = arith.constant 0 : index
    %c0_1 = arith.constant 0 : index
    %0 = vector.load %arg1[%c0, %c0_0, %c0_1] : memref<8x16x8xf32, #tpu.memory_space<vmem>>, vector<8x16x8xf32>
    %cst = arith.constant dense<0.000000e+00> : vector<8x8xf32>
    %1 = vector.multi_reduction <add>, %0, %cst [1] : vector<8x16x8xf32> to vector<8x8xf32>
    %2 = arith.mulf %0, %0 : vector<8x16x8xf32>
    %cst_2 = arith.constant dense<0.000000e+00> : vector<8x8xf32>
    %3 = vector.multi_reduction <add>, %2, %cst_2 [1] : vector<8x16x8xf32> to vector<8x8xf32>
    %4 = arith.mulf %1, %1 : vector<8x8xf32>
    %cst_3 = arith.constant 1.600000e+01 : f32
    %5 = vector.broadcast %cst_3 : f32 to vector<8x8xf32>
    %6 = arith.divf %4, %5 : vector<8x8xf32>
    %7 = arith.subf %3, %6 : vector<8x8xf32>
    %cst_4 = arith.constant 1.500000e+01 : f32
    %8 = vector.broadcast %cst_4 : f32 to vector<8x8xf32>
    %9 = arith.divf %7, %8 : vector<8x8xf32>
    %cst_5 = arith.constant 0.000000e+00 : f32
    %10 = vector.broadcast %cst_5 : f32 to vector<8x8xf32>
    %11 = arith.maximumf %9, %10 : vector<8x8xf32>
    %12 = math.log %11 : vector<8x8xf32>
    %cst_6 = arith.constant 0xFF800000 : f32
    %13 = vector.broadcast %cst_6 : f32 to vector<8x8xf32>
    %14 = arith.cmpf oeq, %12, %13 : vector<8x8xf32>
    %cst_7 = arith.constant 0.000000e+00 : f32
    %15 = vector.broadcast %cst_7 : f32 to vector<8x8xf32>
    %16 = arith.select %14, %15, %12 : vector<8x8xi1>, vector<8x8xf32>
    %c0_8 = arith.constant 0 : index
    %c0_9 = arith.constant 0 : index
    %17 = vector.load %arg2[%c0_8, %c0_9] : memref<8x8xf32, #tpu.memory_space<vmem>>, vector<8x8xf32>
    tpu.vector_store %arg2[%c0_8, %c0_9], %16 {strides = array<i32>} : memref<8x8xf32, #tpu.memory_space<vmem>>, vector<8x8xf32>,
    return
  }
  func.func @transform_0(%arg0: i32) -> (i32, i32, i32) {
    %c0_i32 = arith.constant 0 : i32
    %c0_i32_0 = arith.constant 0 : i32
    %c0_i32_1 = arith.constant 0 : i32
    return %c0_i32, %c0_i32_0, %arg0 : i32, i32, i32
  }
  func.func @transform_1(%arg0: i32) -> (i32, i32) {
    %c0_i32 = arith.constant 0 : i32
    %c0_i32_0 = arith.constant 0 : i32
    return %c0_i32, %arg0 : i32, i32
  }
}

</mosaic_0001>

<llo_original>
// kernel: tpu_custom_call.1
$region0: #{tpu_custom_call.1}
  #allocation0 [shape = 'u32[]', space=smem, size = 0x4, offset = 0x4, fixed_abs, tag = 'smem constant byte address 0x4 - core index']
  #allocation1 [shape = 'u32[72,128]{1,0:T(1,128)}', space=vmem, size = 0x9000, scoped, tag = 'internal scratch']
  %s0 = inlined_call_operand.vmem [shape: f32[8,16,8], index: 0, kind: input, shape index: {}]
  %s1 = inlined_call_operand.hbm [shape: f32[8,8], index: 1, kind: output, shape index: {}]
  %s2 = sld [smem:[#allocation0]]
  $region14: #{tpu_custom_call.1} parent=0
    _
  %s4 = ssub.s32 1, %s2
  %s5 = scalar_select 0, %s4, %s2
  $region1: #{tpu_custom_call.1} parent=0
    #allocation2 [shape = 'u8[4096]{0}', space=vmem, size = 0x1000, scoped, tag = 'output window, operand 0, single buffered']
    #allocation3 [shape = 's32[1]{0}', space=sflag, size = 0x4, scoped, tag = 'scoped memory for tpu_custom_call.1']
    %6 = vsyncpa [#allocation3], 0
    // Predicated region
    $region2: #{tpu_custom_call.1} parent=1 // pred_check
      _
    $region3: #{tpu_custom_call.1} parent=1 // pred_check_branch
      %8 = sbr.rel (0) target = $region5
    $region4: #{tpu_custom_call.1} parent=1 // pred_region
      _
    $region5: #{tpu_custom_call.1} parent=1 // pred_fallthru
      _
    %v9 = vld [vmem:[%s0] sm:$0xff]
    %v10 = vld [vmem:[%s0 + $0x8] sm:$0xff]
    %v11 = vld [vmem:[%s0 + $0x10] sm:$0xff]
    %v12 = vld [vmem:[%s0 + $0x18] sm:$0xff]
    %v13 = vld [vmem:[%s0 + $0x20] sm:$0xff]
    %v14 = vld [vmem:[%s0 + $0x28] sm:$0xff]
    %v15 = vld [vmem:[%s0 + $0x30] sm:$0xff]
    %v16 = vld [vmem:[%s0 + $0x38] sm:$0xff]
    %v17 = vld [vmem:[%s0 + $0x40] sm:$0xff]
    %v18 = vld [vmem:[%s0 + $0x48] sm:$0xff]
    %v19 = vld [vmem:[%s0 + $0x50] sm:$0xff]
    %v20 = vld [vmem:[%s0 + $0x58] sm:$0xff]
    %v21 = vld [vmem:[%s0 + $0x60] sm:$0xff]
    %v22 = vld [vmem:[%s0 + $0x68] sm:$0xff]
    %v23 = vld [vmem:[%s0 + $0x70] sm:$0xff]
    %v24 = vld [vmem:[%s0 + $0x78] sm:$0xff]
    %vm25 = vcmask 64512
    %v26 = vsel %vm25, %v9, 0.0
    %v27 = vsel %vm25, %v10, 0.0
    %v28 = vadd.f32 %v26, %v27
    %v29 = vrot.slane %v28, 4
    %v30 = vadd.f32 %v28, %v29
    %v31 = vrot.slane %v30, 2
    %v32 = vadd.f32 %v30, %v31
    %v33 = vrot.slane %v32, 1
    %v34 = vadd.f32 %v32, %v33
    %v35 = vsel %vm25, %v11, 0.0
    %v36 = vsel %vm25, %v12, 0.0
    %v37 = vadd.f32 %v35, %v36
    %v38 = vrot.slane %v37, 4
    %v39 = vadd.f32 %v37, %v38
    %v40 = vrot.slane %v39, 2
    %v41 = vadd.f32 %v39, %v40
    %v42 = vrot.slane %v41, 1
    %v43 = vadd.f32 %v41, %v42
    %v44 = vsel %vm25, %v13, 0.0
    %v45 = vsel %vm25, %v14, 0.0
    %v46 = vadd.f32 %v44, %v45
    %v47 = vrot.slane %v46, 4
    %v48 = vadd.f32 %v46, %v47
    %v49 = vrot.slane %v48, 2
    %v50 = vadd.f32 %v48, %v49
    %v51 = vrot.slane %v50, 1
    %v52 = vadd.f32 %v50, %v51
    %v53 = vsel %vm25, %v15, 0.0
    %v54 = vsel %vm25, %v16, 0.0
    %v55 = vadd.f32 %v53, %v54
    %v56 = vrot.slane %v55, 4
    %v57 = vadd.f32 %v55, %v56
    %v58 = vrot.slane %v57, 2
    %v59 = vadd.f32 %v57, %v58
    %v60 = vrot.slane %v59, 1
    %v61 = vadd.f32 %v59, %v60
    %v62 = vsel %vm25, %v17, 0.0
    %v63 = vsel %vm25, %v18, 0.0
    %v64 = vadd.f32 %v62, %v63
    %v65 = vrot.slane %v64, 4
    %v66 = vadd.f32 %v64, %v65
    %v67 = vrot.slane %v66, 2
    %v68 = vadd.f32 %v66, %v67
    %v69 = vrot.slane %v68, 1
    %v70 = vadd.f32 %v68, %v69
    %v71 = vsel %vm25, %v19, 0.0
    %v72 = vsel %vm25, %v20, 0.0
    %v73 = vadd.f32 %v71, %v72
    %v74 = vrot.slane %v73, 4
    %v75 = vadd.f32 %v73, %v74
    %v76 = vrot.slane %v75, 2
    %v77 = vadd.f32 %v75, %v76
    %v78 = vrot.slane %v77, 1
    %v79 = vadd.f32 %v77, %v78
    %v80 = vsel %vm25, %v21, 0.0
    %v81 = vsel %vm25, %v22, 0.0
    %v82 = vadd.f32 %v80, %v81
    %v83 = vrot.slane %v82, 4
    %v84 = vadd.f32 %v82, %v83
    %v85 = vrot.slane %v84, 2
    %v86 = vadd.f32 %v84, %v85
    %v87 = vrot.slane %v86, 1
    %v88 = vadd.f32 %v86, %v87
    %v89 = vsel %vm25, %v23, 0.0
    %v90 = vsel %vm25, %v24, 0.0
    %v91 = vadd.f32 %v89, %v90
    %v92 = vrot.slane %v91, 4
    %v93 = vadd.f32 %v91, %v92
    %v94 = vrot.slane %v93, 2
    %v95 = vadd.f32 %v93, %v94
    %v96 = vrot.slane %v95, 1
    %v97 = vadd.f32 %v95, %v96
    %v98 = vmul.f32 %v9, %v9
    %v99 = vmul.f32 %v10, %v10
    %v100 = vmul.f32 %v11, %v11
    %v101 = vmul.f32 %v12, %v12
    %v102 = vmul.f32 %v13, %v13
    %v103 = vmul.f32 %v14, %v14
    %v104 = vmul.f32 %v15, %v15
    %v105 = vmul.f32 %v16, %v16
    %v106 = vmul.f32 %v17, %v17
    %v107 = vmul.f32 %v18, %v18
    %v108 = vmul.f32 %v19, %v19
    %v109 = vmul.f32 %v20, %v20
    %v110 = vmul.f32 %v21, %v21
    %v111 = vmul.f32 %v22, %v22
    %v112 = vmul.f32 %v23, %v23
    %v113 = vmul.f32 %v24, %v24
    %v114 = vsel %vm25, %v98, 0.0
    %v115 = vsel %vm25, %v99, 0.0
    %v116 = vadd.f32 %v114, %v115
    %v117 = vrot.slane %v116, 4
    %v118 = vadd.f32 %v116, %v117
    %v119 = vrot.slane %v118, 2
    %v120 = vadd.f32 %v118, %v119
    %v121 = vrot.slane %v120, 1
    %v122 = vadd.f32 %v120, %v121
    %v123 = vsel %vm25, %v100, 0.0
    %v124 = vsel %vm25, %v101, 0.0
    %v125 = vadd.f32 %v123, %v124
    %v126 = vrot.slane %v125, 4
    %v127 = vadd.f32 %v125, %v126
    %v128 = vrot.slane %v127, 2
    %v129 = vadd.f32 %v127, %v128
    %v130 = vrot.slane %v129, 1
    %v131 = vadd.f32 %v129, %v130
    %v132 = vsel %vm25, %v102, 0.0
    %v133 = vsel %vm25, %v103, 0.0
    %v134 = vadd.f32 %v132, %v133
    %v135 = vrot.slane %v134, 4
    %v136 = vadd.f32 %v134, %v135
    %v137 = vrot.slane %v136, 2
    %v138 = vadd.f32 %v136, %v137
    %v139 = vrot.slane %v138, 1
    %v140 = vadd.f32 %v138, %v139
    %v141 = vsel %vm25, %v104, 0.0
    %v142 = vsel %vm25, %v105, 0.0
    %v143 = vadd.f32 %v141, %v142
    %v144 = vrot.slane %v143, 4
    %v145 = vadd.f32 %v143, %v144
    %v146 = vrot.slane %v145, 2
    %v147 = vadd.f32 %v145, %v146
    %v148 = vrot.slane %v147, 1
    %v149 = vadd.f32 %v147, %v148
    %v150 = vsel %vm25, %v106, 0.0
    %v151 = vsel %vm25, %v107, 0.0
    %v152 = vadd.f32 %v150, %v151
    %v153 = vrot.slane %v152, 4
    %v154 = vadd.f32 %v152, %v153
    %v155 = vrot.slane %v154, 2
    %v156 = vadd.f32 %v154, %v155
    %v157 = vrot.slane %v156, 1
    %v158 = vadd.f32 %v156, %v157
    %v159 = vsel %vm25, %v108, 0.0
    %v160 = vsel %vm25, %v109, 0.0
    %v161 = vadd.f32 %v159, %v160
    %v162 = vrot.slane %v161, 4
    %v163 = vadd.f32 %v161, %v162
    %v164 = vrot.slane %v163, 2
    %v165 = vadd.f32 %v163, %v164
    %v166 = vrot.slane %v165, 1
    %v167 = vadd.f32 %v165, %v166
    %v168 = vsel %vm25, %v110, 0.0
    %v169 = vsel %vm25, %v111, 0.0
    %v170 = vadd.f32 %v168, %v169
    %v171 = vrot.slane %v170, 4
    %v172 = vadd.f32 %v170, %v171
    %v173 = vrot.slane %v172, 2
    %v174 = vadd.f32 %v172, %v173
    %v175 = vrot.slane %v174, 1
    %v176 = vadd.f32 %v174, %v175
    %v177 = vsel %vm25, %v112, 0.0
    %v178 = vsel %vm25, %v113, 0.0
    %v179 = vadd.f32 %v177, %v178
    %v180 = vrot.slane %v179, 4
    %v181 = vadd.f32 %v179, %v180
    %v182 = vrot.slane %v181, 2
    %v183 = vadd.f32 %v181, %v182
    %v184 = vrot.slane %v183, 1
    %v185 = vadd.f32 %v183, %v184
    %v186 = vmul.f32 %v34, %v34
    %v187 = vmul.f32 %v43, %v43
    %v188 = vmul.f32 %v52, %v52
    %v189 = vmul.f32 %v61, %v61
    %v190 = vmul.f32 %v70, %v70
    %v191 = vmul.f32 %v79, %v79
    %v192 = vmul.f32 %v88, %v88
    %v193 = vmul.f32 %v97, %v97
    %v194 = vrcp.pop 16.0
    %v195 = vmul.f32 16.0, %v194
    %v196 = vsub.f32 1.0, %v195
    %v197 = vmul.f32 %v194, %v196
    %v198 = vadd.f32 %v194, %v197
    %vm199 = vweird.f32 %v194
    %v200 = vsel %vm199, %v194, %v198
    %v201 = vmul.f32 %v186, %v200
    %v202 = vmul.f32 %v187, %v200
    %v203 = vmul.f32 %v188, %v200
    %v204 = vmul.f32 %v189, %v200
    %v205 = vmul.f32 %v190, %v200
    %v206 = vmul.f32 %v191, %v200
    %v207 = vmul.f32 %v192, %v200
    %v208 = vmul.f32 %v193, %v200
    %v209 = vsub.f32 %v122, %v201
    %v210 = vsub.f32 %v131, %v202
    %v211 = vsub.f32 %v140, %v203
    %v212 = vsub.f32 %v149, %v204
    %v213 = vsub.f32 %v158, %v205
    %v214 = vsub.f32 %v167, %v206
    %v215 = vsub.f32 %v176, %v207
    %v216 = vsub.f32 %v185, %v208
    %v217 = vrcp.pop 15.0
    %v218 = vmul.f32 15.0, %v217
    %v219 = vsub.f32 1.0, %v218
    %v220 = vmul.f32 %v217, %v219
    %v221 = vadd.f32 %v217, %v220
    %vm222 = vweird.f32 %v217
    %v223 = vsel %vm222, %v217, %v221
    %v224 = vmul.f32 %v209, %v223
    %v225 = vmul.f32 %v210, %v223
    %v226 = vmul.f32 %v211, %v223
    %v227 = vmul.f32 %v212, %v223
    %v228 = vmul.f32 %v213, %v223
    %v229 = vmul.f32 %v214, %v223
    %v230 = vmul.f32 %v215, %v223
    %v231 = vmul.f32 %v216, %v223
    %v232 = vmax.f32 %v224, 0.0
    %v233 = vmax.f32 %v225, 0.0
    %v234 = vmax.f32 %v226, 0.0
    %v235 = vmax.f32 %v227, 0.0
    %v236 = vmax.f32 %v228, 0.0
    %v237 = vmax.f32 %v229, 0.0
    %v238 = vmax.f32 %v230, 0.0
    %v239 = vmax.f32 %v231, 0.0
    %v240 = vlog2.pop %v232
    %v241 = vmul.f32 %v240, 0.6931472
    %v242 = vlog2.pop %v233
    %v243 = vmul.f32 %v242, 0.6931472
    %v244 = vlog2.pop %v234
    %v245 = vmul.f32 %v244, 0.6931472
    %v246 = vlog2.pop %v235
    %v247 = vmul.f32 %v246, 0.6931472
    %v248 = vlog2.pop %v236
    %v249 = vmul.f32 %v248, 0.6931472
    %v250 = vlog2.pop %v237
    %v251 = vmul.f32 %v250, 0.6931472
    %v252 = vlog2.pop %v238
    %v253 = vmul.f32 %v252, 0.6931472
    %v254 = vlog2.pop %v239
    %v255 = vmul.f32 %v254, 0.6931472
    %vm256 = vcmp.eq.f32.partialorder %v241, -inf
    %vm257 = vcmp.eq.f32.partialorder %v243, -inf
    %vm258 = vcmp.eq.f32.partialorder %v245, -inf
    %vm259 = vcmp.eq.f32.partialorder %v247, -inf
    %vm260 = vcmp.eq.f32.partialorder %v249, -inf
    %vm261 = vcmp.eq.f32.partialorder %v251, -inf
    %vm262 = vcmp.eq.f32.partialorder %v253, -inf
    %vm263 = vcmp.eq.f32.partialorder %v255, -inf
    %v264 = vsel %vm256, 0.0, %v241
    %v265 = vsel %vm257, 0.0, %v243
    %v266 = vsel %vm258, 0.0, %v245
    %v267 = vsel %vm259, 0.0, %v247
    %v268 = vsel %vm260, 0.0, %v249
    %v269 = vsel %vm261, 0.0, %v251
    %v270 = vsel %vm262, 0.0, %v253
    %v271 = vsel %vm263, 0.0, %v255
    %vm280 = vcmask 1041409
    %v281 = vsel %vm280, %v265, %v264
    %vm282 = vcmask 1042434
    %v283 = vsel %vm282, %v266, %v281
    %vm284 = vcmask 1043459
    %v285 = vsel %vm284, %v267, %v283
    %vm286 = vcmask 1044484
    %v287 = vsel %vm286, %v268, %v285
    %vm288 = vcmask 1045509
    %v289 = vsel %vm288, %v269, %v287
    %vm290 = vcmask 1046534
    %v291 = vsel %vm290, %v270, %v289
    %vm292 = vcmask 1047559
    %v293 = vsel %vm292, %v271, %v291
    %295 = vst.msk [vmem:[#allocation2] sm:$0xff] %vm25, %v293
    // Predicated region
    $region6: #{tpu_custom_call.1} parent=1 // pred_check
      _
    $region7: #{tpu_custom_call.1} parent=1 // pred_check_branch
      %297 = sbr.rel (0) target = $region9
    $region8: #{tpu_custom_call.1} parent=1 // pred_region
      %299 = vsyncadd [#allocation3], 0
      %s301 = sshll.u32 [#allocation2], 4
      %s302 = int_to_ptr.vmem [resolvable:$true] %s301
      %s303 = sshll.u32 %s1, 4
      %s304 = int_to_ptr.hbm [resolvable:$true] %s303
      %306 = dma.vmem_to_hbm [thread:$0]  %s302, 128, %s304, [#allocation3]
    $region9: #{tpu_custom_call.1} parent=1 // pred_fallthru
      _
    // Predicated region
    $region10: #{tpu_custom_call.1} parent=1 // pred_check
      _
    $region11: #{tpu_custom_call.1} parent=1 // pred_check_branch
      %308 = sbr.rel (0) target = $region13
    $region12: #{tpu_custom_call.1} parent=1 // pred_region
      %310 = dma.done [#allocation3], 128
    $region13: #{tpu_custom_call.1} parent=1 // pred_fallthru
      _
    %311 = vsyncpa [#allocation3], 1

</llo_original>
